<compile_context>
chip_gen: v7x
topology: tpu7x:2x2x1
jax: 0.10.0
libtpu: 0.0.40
codegen_flags: <defaults>
</compile_context>

<pallas_src>
import jax
import jax.numpy as jnp
from jax.experimental import pallas as pl
from jax.experimental.pallas import tpu as pltpu

# Fallback for older JAX releases that still expose TPUCompilerParams.
_CompilerParams = getattr(pltpu, "CompilerParams", None) or getattr(
    pltpu, "TPUCompilerParams"
)


def _round_up(x, m):
    return (x + m - 1) // m * m


# --------------------------- Pallas aggregation kernel ---------------------- #
def _gcn_agg_kernel(a_ref, ms_ref, ms_self_ref, d_ref, b_ref, o_ref, acc_ref):
    """One (row-tile i, reduction-tile k) step of
         out = ReLU( D^-1/2 (A_off + I) D^-1/2 (H W) + b )
       with the D^-1/2 column scale already folded into `ms` (= D^-1/2 * H W).

       a_ref       (TM, TK) bf16  raw adjacency tile (self-loops removed)
       ms_ref      (TK, Hp) bf16  column-scaled features, reduction tile
       ms_self_ref (TM, Hp) bf16  column-scaled features, row tile (+I term)
       d_ref       (TM, 1)  f32   D^-1/2 row scale
       b_ref       (1, Hp)  f32   bias
       o_ref       (TM, Hp) f32   output tile
       acc_ref     (TM, Hp) f32   VMEM accumulator scratch
    """
    k = pl.program_id(1)

    @pl.when(k == 0)
    def _init():
        acc_ref[...] = jnp.zeros_like(acc_ref)

    acc_ref[...] += jnp.dot(
        a_ref[...], ms_ref[...], preferred_element_type=jnp.float32
    )

    @pl.when(k == pl.num_programs(1) - 1)
    def _finalize():
        # fused normalization finalize: +I self-loop term, row scale, bias, ReLU
        agg = acc_ref[...] + ms_self_ref[...].astype(jnp.float32)
        out = d_ref[...] * agg + b_ref[...]
        o_ref[...] = jnp.maximum(out, 0.0)


def pallas_gcn_aggregate(a_pad, ms, d_col, b_row, *, tile):
    """out = ReLU(D^-1/2 (A_off + I) (ms) + b) with ms = D^-1/2 * (H W)."""
    npad, hp = ms.shape
    assert npad % tile == 0 and hp % 128 == 0 and tile % 128 == 0
    grid = (npad // tile, npad // tile)
    return pl.pallas_call(
        _gcn_agg_kernel,
        out_shape=jax.ShapeDtypeStruct((npad, hp), jnp.float32),
        grid=grid,
        in_specs=[
            pl.BlockSpec((tile, tile), lambda i, k: (i, k)),  # adjacency (bf16)
            pl.BlockSpec((tile, hp), lambda i, k: (k, 0)),    # ms, reduction tile
            pl.BlockSpec((tile, hp), lambda i, k: (i, 0)),    # ms, self-loop tile
            pl.BlockSpec((tile, 1), lambda i, k: (i, 0)),     # D^-1/2 row scale
            pl.BlockSpec((1, hp), lambda i, k: (0, 0)),       # bias
        ],
        out_specs=pl.BlockSpec((tile, hp), lambda i, k: (i, 0)),
        scratch_shapes=[pltpu.VMEM((tile, hp), jnp.float32)],
        compiler_params=_CompilerParams(
            dimension_semantics=("parallel", "arbitrary"),
            vmem_limit_bytes=48 * 1024 * 1024,  # headroom, < v7x 64 MiB physical
        ),
    )(a_pad, ms, ms, d_col, b_row)


# ------------------------------- forward ----------------------------------- #
def model_forward(adj, features_list, params, *, tile=512):
    """adj: dense (N,N) fp32 0/1 adjacency of the homogeneous graph (no norm).
    features_list: dict {node_type: (n_t, in_dim_t) fp32}.
    NOTE: assumes an unweighted (0/1) adjacency, matching DGL's
    remove_self_loop + add_self_loop semantics for unweighted graphs."""
    keys = list(features_list.keys())

    # 1) per-type input projections: tiny (n_t, in_t)@(in_t, hid) -> plain XLA
    #    (removes per-type pallas_call launch overhead).
    hs, keys_index, total = [], [], 0
    for i, key in enumerate(keys):
        x = features_list[key]
        total += x.shape[0]
        keys_index.append(total)
        w, b = params["fc"][i]
        hs.append(jnp.dot(x, w) + b)
    h = jnp.concatenate(hs, axis=0)  # (N, hid) f32
    n, hid = h.shape

    # 2) one-time graph prep. The normalized adjacency is NEVER materialized.
    #    deg of (A_no_self + I): the +1 self-loop guarantees deg >= 1, so rsqrt
    #    needs no eps clamp (do not drop this if self-loops are ever removed).
    deg = adj.sum(axis=1) - jnp.diagonal(adj) + 1.0
    d = jax.lax.rsqrt(deg)

    tile = min(tile, _round_up(n, 128))
    npad = _round_up(n, tile)
    hp = _round_up(hid, 128)  # lane-dense feature axis (128-wide vreg lanes)

    idx = jnp.arange(n)
    a_off = jnp.where(idx[:, None] == idx[None, :], 0.0, adj)  # drop self loops
    a_pad = jnp.pad(a_off, ((0, npad - n), (0, npad - n))).astype(jnp.bfloat16)
    d_pad = jnp.pad(d, (0, npad - n), constant_values=1.0).reshape(npad, 1)
    h_pad = jnp.pad(h, ((0, npad - n), (0, hp - hid)))  # (npad, hp) f32

    # 3) graph-conv layers. adjacency (bf16) streamed per layer; h round-trips
    #    HBM between layers (cheap; see header NOTE about why not VMEM-resident).
    for (w, b, use_weight) in params["layers"]:
        # dropout(p=0.0) -> identity
        if use_weight:
            w_pad = jnp.pad(w, ((0, hp - hid), (0, hp - hid)))
            m = jnp.dot(h_pad, w_pad)          # (A@H)@W == A@(H@W), done once
        else:
            m = h_pad
        b_pad = jnp.pad(b, (0, hp - hid)).reshape(1, hp)
        ms = (d_pad * m).astype(jnp.bfloat16)  # fold D^-1/2 column scale
        h_pad = pallas_gcn_aggregate(a_pad, ms, d_pad, b_pad, tile=tile)

    h_out = h_pad[:n, :hid]
    res = {}
    for i, key in enumerate(keys):
        start = 0 if i == 0 else keys_index[i - 1]
        res[key] = h_out[start:keys_index[i]]
    return res


# ------------------------- pure-JAX reference (check) ----------------------- #
def reference_forward(adj, features_list, params):
    keys = list(features_list.keys())
    hs, keys_index, total = [], [], 0
    for i, key in enumerate(keys):
        x = features_list[key]
        total += x.shape[0]
        keys_index.append(total)
        w, b = params["fc"][i]
        hs.append(jnp.dot(x, w) + b)
    h = jnp.concatenate(hs, axis=0)
    n = adj.shape[0]
    eye = jnp.eye(n, dtype=adj.dtype)
    a_hat = adj * (1.0 - eye) + eye
    dinv = jax.lax.rsqrt(a_hat.sum(axis=1))
    a_norm = dinv[:, None] * a_hat * dinv[None, :]
    for (w, b, use_weight) in params["layers"]:
        h = jnp.dot(a_norm, h)
        if use_weight:
            h = jnp.dot(h, w)
        h = jnp.maximum(h + b, 0.0)
    res = {}
    for i, key in enumerate(keys):
        start = 0 if i == 0 else keys_index[i - 1]
        res[key] = h[start:keys_index[i]]
    return res


# ------------------------- deterministic param init ------------------------ #
def _xavier_normal(key, shape, gain):
    fan_in, fan_out = shape
    std = gain * (2.0 / (fan_in + fan_out)) ** 0.5
    return std * jax.random.normal(key, shape, dtype=jnp.float32)


def _xavier_uniform(key, shape):
    fan_in, fan_out = shape
    bound = (6.0 / (fan_in + fan_out)) ** 0.5
    return jax.random.uniform(key, shape, jnp.float32, -bound, bound)


def init_params(key, in_dims, num_hidden, num_layers):
    params = {"fc": [], "layers": []}
    for in_dim in in_dims:
        key, kw, kb = jax.random.split(key, 3)
        w = _xavier_normal(kw, (in_dim, num_hidden), gain=1.414)
        bound = 1.0 / (in_dim ** 0.5)
        b = jax.random.uniform(kb, (num_hidden,), jnp.float32, -bound, bound)
        params["fc"].append((w, b))

    # layer 0: GraphConv(weight=False) -> no weight matmul, bias zeros
    params["layers"].append((None, jnp.zeros((num_hidden,), jnp.float32), False))
    for _ in range(num_layers - 1):
        key, kw = jax.random.split(key)
        w = _xavier_uniform(kw, (num_hidden, num_hidden))
        b = jnp.zeros((num_hidden,), jnp.float32)  # DGL inits GraphConv bias to 0
        params["layers"].append((w, b, True))
    return params


# --------------------------------- main ------------------------------------ #
if __name__ == "__main__":
    key = jax.random.PRNGKey(0)

    in_dims = [6, 10]          # two node types with different raw feature dims
    n_per_type = [96, 150]     # N = 246: not a tile multiple -> exercises padding
    num_hidden = 32
    num_layers = 2
    N = sum(n_per_type)

    key, k0, k1, ka = jax.random.split(key, 4)
    features_list = {
        "type_a": jax.random.normal(k0, (n_per_type[0], in_dims[0]), jnp.float32),
        "type_b": jax.random.normal(k1, (n_per_type[1], in_dims[1]), jnp.float32),
    }

    # random symmetric 0/1 adjacency for the homogeneous graph
    adj = (jax.random.uniform(ka, (N, N)) < 0.1).astype(jnp.float32)
    adj = jnp.maximum(adj, adj.T)

    params = init_params(key, in_dims, num_hidden, num_layers)

    # tile=128 so this small demo exercises a real (2, 2) grid with
    # accumulation over the reduction axis; the production default is 512.
    res = model_forward(adj, features_list, params, tile=128)
    ref = reference_forward(adj, features_list, params)

    sizes = dict(zip(features_list.keys(), n_per_type))
    for k_ in features_list:
        out = jax.block_until_ready(res[k_])
        assert out.shape == (sizes[k_], num_hidden)
        assert bool(jnp.allclose(out, ref[k_], rtol=5e-2, atol=5e-2)), (
            "Pallas result does not match the JAX reference for " + k_
        )

    print("KERNEL_OK")
</pallas_src>

<mosaic_0001>
module attributes {stable_mosaic.version = 11 : i64} {
  func.func @_gcn_agg_kernel(%arg0: i32, %arg1: i32, %arg2: memref<128x128xbf16, #tpu.memory_space<vmem>>, %arg3: memref<128x128xbf16, #tpu.memory_space<vmem>>, %arg4: memref<128x128xbf16, #tpu.memory_space<vmem>>, %arg5: memref<128x1xf32, #tpu.memory_space<vmem>>, %arg6: memref<1x128xf32, #tpu.memory_space<vmem>>, %arg7: memref<128x128xf32, #tpu.memory_space<vmem>>, %arg8: memref<128x128xf32, #tpu.memory_space<vmem>>) attributes {dimension_semantics = [#tpu.dimension_semantics<parallel>, #tpu.dimension_semantics<arbitrary>], iteration_bounds = array<i64: 2, 2>, scalar_prefetch = 0 : i64, scratch_operands = 1 : i64, tpu.core_type = #tpu.core_type<tc>, window_params = [{transform_indices = @transform_0, window_bounds = array<i64: 128, 128>}, {transform_indices = @transform_1, window_bounds = array<i64: 128, 128>}, {transform_indices = @transform_2, window_bounds = array<i64: 128, 128>}, {transform_indices = @transform_3, window_bounds = array<i64: 128, 1>}, {pipeline_mode = #tpu.pipeline_mode<synchronous>, transform_indices = @transform_4, window_bounds = array<i64: 1, 128>}, {transform_indices = @transform_5, window_bounds = array<i64: 128, 128>}]} {
    %c0_i32 = arith.constant 0 : i32
    %0 = arith.cmpi eq, %arg1, %c0_i32 : i32
    %1 = arith.extui %0 : i1 to i32
    %c0_i32_0 = arith.constant 0 : i32
    %2 = arith.cmpi ne, %1, %c0_i32_0 : i32
    scf.if %2 {
      %cst_9 = arith.constant 0.000000e+00 : f32
      %12 = vector.broadcast %cst_9 : f32 to vector<128x128xf32>
      %c0_10 = arith.constant 0 : index
      %c0_11 = arith.constant 0 : index
      %13 = vector.load %arg8[%c0_10, %c0_11] : memref<128x128xf32, #tpu.memory_space<vmem>>, vector<128x128xf32>
      tpu.vector_store %arg8[%c0_10, %c0_11], %12 {strides = array<i32>} : memref<128x128xf32, #tpu.memory_space<vmem>>, vector<128x128xf32>,
    } else {
    }
    %c0 = arith.constant 0 : index
    %c0_1 = arith.constant 0 : index
    %3 = vector.load %arg8[%c0, %c0_1] : memref<128x128xf32, #tpu.memory_space<vmem>>, vector<128x128xf32>
    %c0_2 = arith.constant 0 : index
    %c0_3 = arith.constant 0 : index
    %4 = vector.load %arg2[%c0_2, %c0_3] : memref<128x128xbf16, #tpu.memory_space<vmem>>, vector<128x128xbf16>
    %c0_4 = arith.constant 0 : index
    %c0_5 = arith.constant 0 : index
    %5 = vector.load %arg3[%c0_4, %c0_5] : memref<128x128xbf16, #tpu.memory_space<vmem>>, vector<128x128xbf16>
    %cst = arith.constant dense<0.000000e+00> : vector<128x128xf32>
    %6 = tpu.matmul %4, %5, %cst {dimension_numbers = #tpu.dot_dimension_numbers<[1], [0], [0], [1], [0, 0, 1, 1], [], []>} : vector<128x128xbf16>, vector<128x128xbf16>, vector<128x128xf32> -> vector<128x128xf32>
    %7 = arith.addf %3, %6 : vector<128x128xf32>
    %c0_6 = arith.constant 0 : index
    %c0_7 = arith.constant 0 : index
    %8 = vector.load %arg8[%c0_6, %c0_7] : memref<128x128xf32, #tpu.memory_space<vmem>>, vector<128x128xf32>
    tpu.vector_store %arg8[%c0_6, %c0_7], %7 {strides = array<i32>} : memref<128x128xf32, #tpu.memory_space<vmem>>, vector<128x128xf32>,
    %c1_i32 = arith.constant 1 : i32
    %9 = arith.cmpi eq, %arg1, %c1_i32 : i32
    %10 = arith.extui %9 : i1 to i32
    %c0_i32_8 = arith.constant 0 : i32
    %11 = arith.cmpi ne, %10, %c0_i32_8 : i32
    scf.if %11 {
      %c0_9 = arith.constant 0 : index
      %c0_10 = arith.constant 0 : index
      %12 = vector.load %arg8[%c0_9, %c0_10] : memref<128x128xf32, #tpu.memory_space<vmem>>, vector<128x128xf32>
      %c0_11 = arith.constant 0 : index
      %c0_12 = arith.constant 0 : index
      %13 = vector.load %arg4[%c0_11, %c0_12] : memref<128x128xbf16, #tpu.memory_space<vmem>>, vector<128x128xbf16>
      %14 = arith.extf %13 : vector<128x128xbf16> to vector<128x128xf32>
      %15 = arith.addf %12, %14 : vector<128x128xf32>
      %c0_13 = arith.constant 0 : index
      %c0_14 = arith.constant 0 : index
      %16 = vector.load %arg5[%c0_13, %c0_14] : memref<128x1xf32, #tpu.memory_space<vmem>>, vector<128x1xf32>
      %17 = vector.broadcast %16 : vector<128x1xf32> to vector<128x128xf32>
      %18 = arith.mulf %17, %15 : vector<128x128xf32>
      %c0_15 = arith.constant 0 : index
      %c0_16 = arith.constant 0 : index
      %19 = vector.load %arg6[%c0_15, %c0_16] : memref<1x128xf32, #tpu.memory_space<vmem>>, vector<1x128xf32>
      %20 = vector.broadcast %19 : vector<1x128xf32> to vector<128x128xf32>
      %21 = arith.addf %18, %20 : vector<128x128xf32>
      %cst_17 = arith.constant 0.000000e+00 : f32
      %22 = vector.broadcast %cst_17 : f32 to vector<128x128xf32>
      %23 = arith.maximumf %21, %22 : vector<128x128xf32>
      %c0_18 = arith.constant 0 : index
      %c0_19 = arith.constant 0 : index
      %24 = vector.load %arg7[%c0_18, %c0_19] : memref<128x128xf32, #tpu.memory_space<vmem>>, vector<128x128xf32>
      tpu.vector_store %arg7[%c0_18, %c0_19], %23 {strides = array<i32>} : memref<128x128xf32, #tpu.memory_space<vmem>>, vector<128x128xf32>,
    } else {
    }
    return
  }
  func.func @transform_0(%arg0: i32, %arg1: i32) -> (i32, i32) {
    %c0_i32 = arith.constant 0 : i32
    return %arg0, %arg1 : i32, i32
  }
  func.func @transform_1(%arg0: i32, %arg1: i32) -> (i32, i32) {
    %c0_i32 = arith.constant 0 : i32
    %c0_i32_0 = arith.constant 0 : i32
    return %arg1, %c0_i32 : i32, i32
  }
  func.func @transform_2(%arg0: i32, %arg1: i32) -> (i32, i32) {
    %c0_i32 = arith.constant 0 : i32
    %c0_i32_0 = arith.constant 0 : i32
    return %arg0, %c0_i32 : i32, i32
  }
  func.func @transform_3(%arg0: i32, %arg1: i32) -> (i32, i32) {
    %c0_i32 = arith.constant 0 : i32
    %c0_i32_0 = arith.constant 0 : i32
    return %arg0, %c0_i32 : i32, i32
  }
  func.func @transform_4(%arg0: i32, %arg1: i32) -> (i32, i32) {
    %c0_i32 = arith.constant 0 : i32
    %c0_i32_0 = arith.constant 0 : i32
    %c0_i32_1 = arith.constant 0 : i32
    return %c0_i32, %c0_i32_0 : i32, i32
  }
  func.func @transform_5(%arg0: i32, %arg1: i32) -> (i32, i32) {
    %c0_i32 = arith.constant 0 : i32
    %c0_i32_0 = arith.constant 0 : i32
    return %arg0, %c0_i32 : i32, i32
  }
}

</mosaic_0001>

<llo_original>
// kernel: tpu_custom_call.1
$region0: #{tpu_custom_call.1}
  #allocation0 [shape = 'u32[]', space=smem, size = 0x4, offset = 0x4, fixed_abs, tag = 'smem constant byte address 0x4 - core index']
  #allocation1 [shape = 'u32[144,128]{1,0:T(1,128)}', space=vmem, size = 0x12000, scoped, tag = 'internal scratch']
  #allocation2 [shape = 'f32[128,128]{1,0:T(8,128)}', space=vmem, size = 0x10000, scoped, tag = 'scratch operand']
  %s0 = inlined_call_operand.vmem [shape: bf16[256,256], index: 0, kind: input, shape index: {}]
  %s1 = inlined_call_operand.hbm [shape: bf16[256,128], index: 1, kind: input, shape index: {}]
  %s2 = inlined_call_operand.hbm [shape: bf16[256,128], index: 2, kind: input, shape index: {}]
  %s3 = inlined_call_operand.vmem [shape: f32[256,1], index: 3, kind: input, shape index: {}]
  %s4 = inlined_call_operand.vmem [shape: f32[1,128], index: 4, kind: input, shape index: {}]
  %s5 = inlined_call_operand.hbm [shape: f32[256,128], index: 5, kind: output, shape index: {}]
  %s6 = sld [smem:[#allocation0]]
  $region110: #{tpu_custom_call.1} parent=0
    _
  %s8 = ssub.s32 1, %s6
  %s9 = scalar_select 0, %s8, %s6
  $region1: #{tpu_custom_call.1} parent=0
    #allocation3 [shape = 'u8[65536]{0}', space=vmem, size = 0x10000, scoped, tag = 'input window, operand 0']
    #allocation4 [shape = 'u8[65536]{0}', space=vmem, size = 0x10000, scoped, tag = 'input window, operand 1']
    #allocation5 [shape = 's32[2]{0}', space=sflag, size = 0x8, scoped, tag = 'scoped memory for tpu_custom_call.1']
    #allocation6 [shape = 's32[2]{0}', space=sflag, size = 0x8, scoped, tag = 'scoped memory for tpu_custom_call.1']
    #allocation7 [shape = 'u8[65536]{0}', space=vmem, size = 0x10000, scoped, tag = 'input window, operand 2']
    #allocation8 [shape = 's32[2]{0}', space=sflag, size = 0x8, scoped, tag = 'scoped memory for tpu_custom_call.1']
    #allocation9 [shape = 'u8[131072]{0}', space=vmem, size = 0x20000, scoped, tag = 'output window, operand 0']
    %10 = vsyncpa [#allocation5], 0
    %s11 = scalar_lea.sflag [#allocation5], 1
    %12 = vsyncpa %s11, 0
    %13 = vsyncpa [#allocation8], 0
    %s14 = scalar_lea.sflag [#allocation8], 1
    %15 = vsyncpa %s14, 0
    %16 = vsyncpa [#allocation6], 0
    %s17 = scalar_lea.sflag [#allocation6], 1
    %18 = vsyncpa %s17, 0
    loop: start=0, step=1, limit=6
    $region2: #{tpu_custom_call.1} parent=1 // loop_pre_header
      _
    $region3: #{tpu_custom_call.1} parent=1 // loop_header
      %s20 = sphi 0, %s24
      %p21 = scmp.ge.s32.totalorder %s20, 6
      %s27 = sphi 0, %s39
      %s28 = sphi 0, %s35
      %s29 = sphi 0, %s27
      %s30 = sphi 0, %s28
      %s31 = sphi 0, %s29
      %s32 = sphi 0, %s30
      %s44 = sphi 0, %s46
      %s47 = sphi 0, %s44
      %s48 = sphi 0, %s47
      %s64 = sphi 0, %s48
      %s70 = sphi 0, %s72
      %s73 = sphi 0, %s70
      %s74 = sphi 0, %s73
      %s90 = sphi 0, %s74
      %s96 = sphi 0, %s98
      %s99 = sphi 0, %s96
      %s100 = sphi 0, %s99
      %s116 = sphi 0, %s100
      %s122 = sphi 0, %s124
      %s125 = sphi 0, %s122
      %s126 = sphi 0, %s125
      %s142 = sphi 0, %s126
      %s146 = sphi 0, %s146
      %s148 = sphi 0, %s146
      %s149 = sphi 0, %s148
      %s163 = sphi 0, %s149
      %s169 = sphi 0, %s171
      %s172 = sphi 0, %s169
      %s173 = sphi 0, %s172
      %s189 = sphi 0, %s173
    $region4: #{tpu_custom_call.1} parent=1 // loop_header_branch
      %23 = sbr.rel (%p21) target = $region8
    $region5: #{tpu_custom_call.1} parent=1 // loop_body
      %s25 = ssub.s32 %s20, 1
      %s26 = ssub.s32 %s20, 2
      %s33 = sadd.s32 1, %s28
      %p34 = scmp.ge.s32.totalorder %s33, 2
      %s35 = scalar_select %p34, 0, %s33
      %s36 = sadd.s32 1, %s27
      %s37 = scalar_select %p34, %s36, %s27
      %p38 = scmp.ge.s32.totalorder %s37, 2
      %s39 = scalar_select %p38, 0, %s37
      %s40 = ssub.s32 %s27, %s39
      %s41 = ssub.s32 %s28, %s35
      %s42 = sor.u32 %s40, %s41
      %p43 = scmp.eq.s32.totalorder %s42, 0
      %s45 = sadd.s32 %s44, 1
      %s46 = scalar_select %p43, %s44, %s45
      %p49 = pneg %p43
      %p50 = scmp.eq.s32.totalorder %s20, 3
      %p51 = por %p49, %p50
      %p52 = scmp.ne.s32.totalorder %s44, %s47
      %p53 = scmp.eq.s32.totalorder %s20, 0
      %p54 = por %p52, %p53
      %p55 = scmp.ne.s32.totalorder %s44, %s47
      %p56 = scmp.eq.s32.totalorder %s25, 3
      %p57 = por %p55, %p56
      %p58 = scmp.ne.s32.totalorder %s47, %s48
      %p59 = scmp.eq.s32.totalorder %s25, 0
      %p60 = por %p58, %p59
      %p61 = scmp.ne.s32.totalorder %s47, %s48
      %p62 = scmp.eq.s32.totalorder %s26, 3
      %p63 = por %p61, %p62
      %p65 = scmp.ne.s32.totalorder %s48, %s64
      %p66 = scmp.eq.s32.totalorder %s26, 0
      %p67 = por %p65, %p66
      %s68 = ssub.s32 %s28, %s35
      %p69 = scmp.eq.s32.totalorder %s68, 0
      %s71 = sadd.s32 %s70, 1
      %s72 = scalar_select %p69, %s70, %s71
      %p75 = pneg %p69
      %p76 = scmp.eq.s32.totalorder %s20, 3
      %p77 = por %p75, %p76
      %p78 = scmp.ne.s32.totalorder %s70, %s73
      %p79 = scmp.eq.s32.totalorder %s20, 0
      %p80 = por %p78, %p79
      %p81 = scmp.ne.s32.totalorder %s70, %s73
      %p82 = scmp.eq.s32.totalorder %s25, 3
      %p83 = por %p81, %p82
      %p84 = scmp.ne.s32.totalorder %s73, %s74
      %p85 = scmp.eq.s32.totalorder %s25, 0
      %p86 = por %p84, %p85
      %p87 = scmp.ne.s32.totalorder %s73, %s74
      %p88 = scmp.eq.s32.totalorder %s26, 3
      %p89 = por %p87, %p88
      %p91 = scmp.ne.s32.totalorder %s74, %s90
      %p92 = scmp.eq.s32.totalorder %s26, 0
      %p93 = por %p91, %p92
      %s94 = ssub.s32 %s27, %s39
      %p95 = scmp.eq.s32.totalorder %s94, 0
      %s97 = sadd.s32 %s96, 1
      %s98 = scalar_select %p95, %s96, %s97
      %p101 = pneg %p95
      %p102 = scmp.eq.s32.totalorder %s20, 3
      %p103 = por %p101, %p102
      %p104 = scmp.ne.s32.totalorder %s96, %s99
      %p105 = scmp.eq.s32.totalorder %s20, 0
      %p106 = por %p104, %p105
      %p107 = scmp.ne.s32.totalorder %s96, %s99
      %p108 = scmp.eq.s32.totalorder %s25, 3
      %p109 = por %p107, %p108
      %p110 = scmp.ne.s32.totalorder %s99, %s100
      %p111 = scmp.eq.s32.totalorder %s25, 0
      %p112 = por %p110, %p111
      %p113 = scmp.ne.s32.totalorder %s99, %s100
      %p114 = scmp.eq.s32.totalorder %s26, 3
      %p115 = por %p113, %p114
      %p117 = scmp.ne.s32.totalorder %s100, %s116
      %p118 = scmp.eq.s32.totalorder %s26, 0
      %p119 = por %p117, %p118
      %s120 = ssub.s32 %s27, %s39
      %p121 = scmp.eq.s32.totalorder %s120, 0
      %s123 = sadd.s32 %s122, 1
      %s124 = scalar_select %p121, %s122, %s123
      %p127 = pneg %p121
      %p128 = scmp.eq.s32.totalorder %s20, 3
      %p129 = por %p127, %p128
      %p130 = scmp.ne.s32.totalorder %s122, %s125
      %p131 = scmp.eq.s32.totalorder %s20, 0
      %p132 = por %p130, %p131
      %p133 = scmp.ne.s32.totalorder %s122, %s125
      %p134 = scmp.eq.s32.totalorder %s25, 3
      %p135 = por %p133, %p134
      %p136 = scmp.ne.s32.totalorder %s125, %s126
      %p137 = scmp.eq.s32.totalorder %s25, 0
      %p138 = por %p136, %p137
      %p139 = scmp.ne.s32.totalorder %s125, %s126
      %p140 = scmp.eq.s32.totalorder %s26, 3
      %p141 = por %p139, %p140
      %p143 = scmp.ne.s32.totalorder %s126, %s142
      %p144 = scmp.eq.s32.totalorder %s26, 0
      %p145 = por %p143, %p144
      %s147 = sadd.s32 %s146, 1
      %p150 = scmp.eq.s32.totalorder %s20, 3
      %p151 = scmp.ne.s32.totalorder %s146, %s148
      %p152 = scmp.eq.s32.totalorder %s20, 0
      %p153 = por %p151, %p152
      %p154 = scmp.ne.s32.totalorder %s146, %s148
      %p155 = scmp.eq.s32.totalorder %s25, 3
      %p156 = por %p154, %p155
      %p157 = scmp.ne.s32.totalorder %s148, %s149
      %p158 = scmp.eq.s32.totalorder %s25, 0
      %p159 = por %p157, %p158
      %p160 = scmp.ne.s32.totalorder %s148, %s149
      %p161 = scmp.eq.s32.totalorder %s26, 3
      %p162 = por %p160, %p161
      %p164 = scmp.ne.s32.totalorder %s149, %s163
      %p165 = scmp.eq.s32.totalorder %s26, 0
      %p166 = por %p164, %p165
      %s167 = ssub.s32 %s27, %s39
      %p168 = scmp.eq.s32.totalorder %s167, 0
      %s170 = sadd.s32 %s169, 1
      %s171 = scalar_select %p168, %s169, %s170
      %p174 = pneg %p168
      %p175 = scmp.eq.s32.totalorder %s20, 3
      %p176 = por %p174, %p175
      %p177 = scmp.ne.s32.totalorder %s169, %s172
      %p178 = scmp.eq.s32.totalorder %s20, 0
      %p179 = por %p177, %p178
      %p180 = scmp.ne.s32.totalorder %s169, %s172
      %p181 = scmp.eq.s32.totalorder %s25, 3
      %p182 = por %p180, %p181
      %p183 = scmp.ne.s32.totalorder %s172, %s173
      %p184 = scmp.eq.s32.totalorder %s25, 0
      %p185 = por %p183, %p184
      %p186 = scmp.ne.s32.totalorder %s172, %s173
      %p187 = scmp.eq.s32.totalorder %s26, 3
      %p188 = por %p186, %p187
      %p190 = scmp.ne.s32.totalorder %s173, %s189
      %p191 = scmp.eq.s32.totalorder %s26, 0
      %p192 = por %p190, %p191
      %p193 = scmp.le.s32.totalorder 1, %s20
      %p194 = scmp.lt.s32.totalorder %s20, 5
      %p195 = pnand %p193, %p194
      %p196 = pneg %p195
      // Predicated region
      $region9: #{tpu_custom_call.1} parent=5 // pred_check
        _
      $region10: #{tpu_custom_call.1} parent=5 // pred_check_branch
        %198 = sbr.rel (%p195) target = $region12
      $region11: #{tpu_custom_call.1} parent=5 // pred_region
        %s199 = ssub.s32 %s20, 1
        // Predicated region
        $region13: #{tpu_custom_call.1} parent=11 // pred_check
          %p200 = pneg %p159
        $region14: #{tpu_custom_call.1} parent=11 // pred_check_branch
          %202 = sbr.rel (%p200) target = $region16
        $region15: #{tpu_custom_call.1} parent=11 // pred_region
          _
        $region16: #{tpu_custom_call.1} parent=11 // pred_fallthru
          _
      $region12: #{tpu_custom_call.1} parent=5 // pred_fallthru
        _
      %p203 = scmp.lt.s32.totalorder %s20, 4
      // Predicated region
      $region17: #{tpu_custom_call.1} parent=5 // pred_check
        %p204 = pneg %p203
      $region18: #{tpu_custom_call.1} parent=5 // pred_check_branch
        %206 = sbr.rel (%p204) target = $region20
      $region19: #{tpu_custom_call.1} parent=5 // pred_region
        // Predicated region
        $region21: #{tpu_custom_call.1} parent=19 // pred_check
          %p207 = pneg %p54
        $region22: #{tpu_custom_call.1} parent=19 // pred_check_branch
          %209 = sbr.rel (%p207) target = $region24
        $region23: #{tpu_custom_call.1} parent=19 // pred_region
          %s210 = sand.u32 %s44, 1
          %s211 = sand.u32 %s44, 1
          %s212 = smul.addr %s211, 64
          %s213 = scalar_lea.vmem [#allocation3], %s212
          %s214 = smul.u32 16, %s27
          %s215 = smul.addr %s214, 2
          %s216 = sadd.s32 %s28, %s215
          %s217 = smul.addr %s216, 4
          %s218 = scalar_lea.vmem %s0, %s217
          // Predicated region
          $region25: #{tpu_custom_call.1} parent=23 // pred_check
            _
          $region26: #{tpu_custom_call.1} parent=23 // pred_check_branch
            %220 = sbr.rel (0) target = $region28
          $region27: #{tpu_custom_call.1} parent=23 // pred_region
            // Predicated region
            $region29: #{tpu_custom_call.1} parent=27 // pred_check
              _
            $region30: #{tpu_custom_call.1} parent=27 // pred_check_branch
              %222 = sbr.rel target = $region32
            $region31: #{tpu_custom_call.1} parent=27 // pred_region
              // Predicated region
              $region44: #{tpu_custom_call.1} parent=31 // pred_check
                _
              $region45: #{tpu_custom_call.1} parent=31 // pred_check_branch
                %267 = sbr.rel (0) target = $region47
              $region46: #{tpu_custom_call.1} parent=31 // pred_region
                loop: start=0, step=1, limit=1
                $region48: #{tpu_custom_call.1} parent=46 // loop_pre_header
                  _
                $region49: #{tpu_custom_call.1} parent=46 // loop_header
                  %s269 = sphi 0, %s273
                  %p270 = scmp.ge.s32.totalorder %s269, 1
                  %s274 = sphi %s218, %s218
                  %s275 = sphi %s213, %s213
                $region50: #{tpu_custom_call.1} parent=46 // loop_header_branch
                  %272 = sbr.rel (%p270) target = $region54
                $region51: #{tpu_custom_call.1} parent=46 // loop_body
                  _
                $region52: #{tpu_custom_call.1} parent=46 // loop_footer
                  %s273 = sadd.s32 1, %s269
                $region53: #{tpu_custom_call.1} parent=46 // loop_footer_branch
                  %268 = sbr.rel target = $region49
                $region54: #{tpu_custom_call.1} parent=46 // loop_exit
                  _
                loop: start=0, step=1, limit=1
                $region55: #{tpu_custom_call.1} parent=46 // loop_pre_header
                  _
                $region56: #{tpu_custom_call.1} parent=46 // loop_header
                  %s278 = sphi 0, %s282
                  %p279 = scmp.ge.s32.totalorder %s278, 1
                  %s283 = sphi %s218, %s218
                  %s284 = sphi %s213, %s213
                $region57: #{tpu_custom_call.1} parent=46 // loop_header_branch
                  %281 = sbr.rel (%p279) target = $region61
                $region58: #{tpu_custom_call.1} parent=46 // loop_body
                  %v285 = vld [vmem:[%s283] sm:$0xf]
                  %286 = vst [vmem:[%s284] sm:$0xf] %v285
                  %v287 = vld [vmem:[%s283 + $0x8] sm:$0xf]
                  %288 = vst [vmem:[%s284 + $0x4] sm:$0xf] %v287
                  %v289 = vld [vmem:[%s283 + $0x10] sm:$0xf]
                  %290 = vst [vmem:[%s284 + $0x8] sm:$0xf] %v289
                  %v291 = vld [vmem:[%s283 + $0x18] sm:$0xf]
                  %292 = vst [vmem:[%s284 + $0xc] sm:$0xf] %v291
                  %v293 = vld [vmem:[%s283 + $0x20] sm:$0xf]
                  %294 = vst [vmem:[%s284 + $0x10] sm:$0xf] %v293
                  %v295 = vld [vmem:[%s283 + $0x28] sm:$0xf]
                  %296 = vst [vmem:[%s284 + $0x14] sm:$0xf] %v295
                  %v297 = vld [vmem:[%s283 + $0x30] sm:$0xf]
                  %298 = vst [vmem:[%s284 + $0x18] sm:$0xf] %v297
                  %v299 = vld [vmem:[%s283 + $0x38] sm:$0xf]
                  %300 = vst [vmem:[%s284 + $0x1c] sm:$0xf] %v299
                  %v301 = vld [vmem:[%s283 + $0x40] sm:$0xf]
                  %302 = vst [vmem:[%s284 + $0x20] sm:$0xf] %v301
                  %v303 = vld [vmem:[%s283 + $0x48] sm:$0xf]
                  %304 = vst [vmem:[%s284 + $0x24] sm:$0xf] %v303
                  %v305 = vld [vmem:[%s283 + $0x50] sm:$0xf]
                  %306 = vst [vmem:[%s284 + $0x28] sm:$0xf] %v305
                  %v307 = vld [vmem:[%s283 + $0x58] sm:$0xf]
                  %308 = vst [vmem:[%s284 + $0x2c] sm:$0xf] %v307
                  %v309 = vld [vmem:[%s283 + $0x60] sm:$0xf]
                  %310 = vst [vmem:[%s284 + $0x30] sm:$0xf] %v309
                  %v311 = vld [vmem:[%s283 + $0x68] sm:$0xf]
                  %312 = vst [vmem:[%s284 + $0x34] sm:$0xf] %v311
                  %v313 = vld [vmem:[%s283 + $0x70] sm:$0xf]
                  %314 = vst [vmem:[%s284 + $0x38] sm:$0xf] %v313
                  %v315 = vld [vmem:[%s283 + $0x78] sm:$0xf]
                  %316 = vst [vmem:[%s284 + $0x3c] sm:$0xf] %v315
                $region59: #{tpu_custom_call.1} parent=46 // loop_footer
                  %s282 = sadd.s32 1, %s278
                $region60: #{tpu_custom_call.1} parent=46 // loop_footer_branch
                  %277 = sbr.rel target = $region56
                $region61: #{tpu_custom_call.1} parent=46 // loop_exit
                  _
              $region47: #{tpu_custom_call.1} parent=31 // pred_fallthru
                _
            $region32: #{tpu_custom_call.1} parent=27 // pred_fallthru
              _
            // Predicated region
            $region33: #{tpu_custom_call.1} parent=27 // pred_check
              _
            $region34: #{tpu_custom_call.1} parent=27 // pred_check_branch
              %224 = sbr.rel (0) target = $region36
            $region35: #{tpu_custom_call.1} parent=27 // pred_region
              loop: start=0, step=1, limit=1
              $region37: #{tpu_custom_call.1} parent=35 // loop_pre_header
                _
              $region38: #{tpu_custom_call.1} parent=35 // loop_header
                %s227 = sphi 0, %s231
                %p228 = scmp.ge.s32.totalorder %s227, 1
                %s232 = sphi %s218, %s218
                %s233 = sphi %s213, %s213
              $region39: #{tpu_custom_call.1} parent=35 // loop_header_branch
                %230 = sbr.rel (%p228) target = $region43
              $region40: #{tpu_custom_call.1} parent=35 // loop_body
                %v234 = vld [vmem:[%s232] sm:$0xf]
                %235 = vst [vmem:[%s233] sm:$0xf] %v234
                %v236 = vld [vmem:[%s232 + $0x8] sm:$0xf]
                %237 = vst [vmem:[%s233 + $0x4] sm:$0xf] %v236
                %v238 = vld [vmem:[%s232 + $0x10] sm:$0xf]
                %239 = vst [vmem:[%s233 + $0x8] sm:$0xf] %v238
                %v240 = vld [vmem:[%s232 + $0x18] sm:$0xf]
                %241 = vst [vmem:[%s233 + $0xc] sm:$0xf] %v240
                %v242 = vld [vmem:[%s232 + $0x20] sm:$0xf]
                %243 = vst [vmem:[%s233 + $0x10] sm:$0xf] %v242
                %v244 = vld [vmem:[%s232 + $0x28] sm:$0xf]
                %245 = vst [vmem:[%s233 + $0x14] sm:$0xf] %v244
                %v246 = vld [vmem:[%s232 + $0x30] sm:$0xf]
                %247 = vst [vmem:[%s233 + $0x18] sm:$0xf] %v246
                %v248 = vld [vmem:[%s232 + $0x38] sm:$0xf]
                %249 = vst [vmem:[%s233 + $0x1c] sm:$0xf] %v248
                %v250 = vld [vmem:[%s232 + $0x40] sm:$0xf]
                %251 = vst [vmem:[%s233 + $0x20] sm:$0xf] %v250
                %v252 = vld [vmem:[%s232 + $0x48] sm:$0xf]
                %253 = vst [vmem:[%s233 + $0x24] sm:$0xf] %v252
                %v254 = vld [vmem:[%s232 + $0x50] sm:$0xf]
                %255 = vst [vmem:[%s233 + $0x28] sm:$0xf] %v254
                %v256 = vld [vmem:[%s232 + $0x58] sm:$0xf]
                %257 = vst [vmem:[%s233 + $0x2c] sm:$0xf] %v256
                %v258 = vld [vmem:[%s232 + $0x60] sm:$0xf]
                %259 = vst [vmem:[%s233 + $0x30] sm:$0xf] %v258
                %v260 = vld [vmem:[%s232 + $0x68] sm:$0xf]
                %261 = vst [vmem:[%s233 + $0x34] sm:$0xf] %v260
                %v262 = vld [vmem:[%s232 + $0x70] sm:$0xf]
                %263 = vst [vmem:[%s233 + $0x38] sm:$0xf] %v262
                %v264 = vld [vmem:[%s232 + $0x78] sm:$0xf]
                %265 = vst [vmem:[%s233 + $0x3c] sm:$0xf] %v264
              $region41: #{tpu_custom_call.1} parent=35 // loop_footer
                %s231 = sadd.s32 1, %s227
              $region42: #{tpu_custom_call.1} parent=35 // loop_footer_branch
                %226 = sbr.rel target = $region38
              $region43: #{tpu_custom_call.1} parent=35 // loop_exit
                _
            $region36: #{tpu_custom_call.1} parent=27 // pred_fallthru
              _
          $region28: #{tpu_custom_call.1} parent=23 // pred_fallthru
            _
          %317 = vnop
        $region24: #{tpu_custom_call.1} parent=19 // pred_fallthru
          _
        // Predicated region
        $region62: #{tpu_custom_call.1} parent=19 // pred_check
          %p318 = pneg %p80
        $region63: #{tpu_custom_call.1} parent=19 // pred_check_branch
          %320 = sbr.rel (%p318) target = $region65
        $region64: #{tpu_custom_call.1} parent=19 // pred_region
          %s321 = sand.u32 %s70, 1
          %s322 = scalar_lea.sflag [#allocation5], %s321
          %s323 = sand.u32 %s70, 1
          %s324 = smul.addr %s323, 64
          %s325 = scalar_lea.vmem [#allocation4], %s324
          %s326 = smul.u32 16, %s28
          %s328 = ssub.s32 1024, 1024
          %329 = vsyncadd %s322, %s328
          %s330 = smul.addr %s326, 64
          %s331 = scalar_lea.hbm %s1, %s330
          %s332 = sshll.u32 %s325, 4
          %s333 = int_to_ptr.vmem [resolvable:$true] %s332
          %338 = dma.hbm_to_vmem [thread:$0]  %s331, 1024, %s333, %s322, 64, 64, 4
        $region65: #{tpu_custom_call.1} parent=19 // pred_fallthru
          _
        // Predicated region
        $region66: #{tpu_custom_call.1} parent=19 // pred_check
          %p339 = pneg %p106
        $region67: #{tpu_custom_call.1} parent=19 // pred_check_branch
          %341 = sbr.rel (%p339) target = $region69
        $region68: #{tpu_custom_call.1} parent=19 // pred_region
          %s342 = sand.u32 %s96, 1
          %s343 = scalar_lea.sflag [#allocation8], %s342
          %s344 = sand.u32 %s96, 1
          %s345 = smul.addr %s344, 64
          %s346 = scalar_lea.vmem [#allocation7], %s345
          %s347 = smul.u32 16, %s27
          %s349 = ssub.s32 1024, 1024
          %350 = vsyncadd %s343, %s349
          %s351 = smul.addr %s347, 64
          %s352 = scalar_lea.hbm %s2, %s351
          %s353 = sshll.u32 %s346, 4
          %s354 = int_to_ptr.vmem [resolvable:$true] %s353
          %359 = dma.hbm_to_vmem [thread:$0]  %s352, 1024, %s354, %s343, 64, 64, 4
        $region69: #{tpu_custom_call.1} parent=19 // pred_fallthru
          _
        // Predicated region
        $region70: #{tpu_custom_call.1} parent=19 // pred_check
          %p360 = pneg %p132
        $region71: #{tpu_custom_call.1} parent=19 // pred_check_branch
          %362 = sbr.rel (%p360) target = $region73
        $region72: #{tpu_custom_call.1} parent=19 // pred_region
          %s363 = smul.u32 16, %s27
          %p364 = scmp.lt.s32.totalorder %s363, 31
          %s365 = scalar_select %p364, %s363, 31
          %s366 = smul.addr %s365, 8
          %s367 = scalar_lea.vmem %s3, %s366
          %s368 = smul.u32 16, %s27
        $region73: #{tpu_custom_call.1} parent=19 // pred_fallthru
          _
      $region20: #{tpu_custom_call.1} parent=5 // pred_fallthru
        _
      %p369 = scmp.le.s32.totalorder 1, %s20
      %p370 = scmp.lt.s32.totalorder %s20, 5
      %p371 = pnand %p369, %p370
      %p372 = pneg %p371
      // Predicated region
      $region74: #{tpu_custom_call.1} parent=5 // pred_check
        _
      $region75: #{tpu_custom_call.1} parent=5 // pred_check_branch
        %374 = sbr.rel (%p371) target = $region77
      $region76: #{tpu_custom_call.1} parent=5 // pred_region
        %s375 = ssub.s32 %s20, 1
        %s376 = sand.u32 %s47, 1
        %s377 = sand.u32 %s47, 1
        %s378 = smul.addr %s377, 64
        %s379 = scalar_lea.vmem [#allocation3], %s378
        // Predicated region
        $region78: #{tpu_custom_call.1} parent=76 // pred_check
          %p380 = pneg %p60
        $region79: #{tpu_custom_call.1} parent=76 // pred_check_branch
          %382 = sbr.rel (%p380) target = $region81
        $region80: #{tpu_custom_call.1} parent=76 // pred_region
          _
        $region81: #{tpu_custom_call.1} parent=76 // pred_fallthru
          _
        %s383 = sand.u32 %s73, 1
        %s384 = scalar_lea.sflag [#allocation5], %s383
        %s385 = sand.u32 %s73, 1
        %s386 = smul.addr %s385, 64
        %s387 = scalar_lea.vmem [#allocation4], %s386
        // Predicated region
        $region82: #{tpu_custom_call.1} parent=76 // pred_check
          %p388 = pneg %p86
        $region83: #{tpu_custom_call.1} parent=76 // pred_check_branch
          %390 = sbr.rel (%p388) target = $region85
        $region84: #{tpu_custom_call.1} parent=76 // pred_region
          %391 = dma.done %s384, 1024
        $region85: #{tpu_custom_call.1} parent=76 // pred_fallthru
          _
        %s392 = sand.u32 %s99, 1
        %s393 = scalar_lea.sflag [#allocation8], %s392
        %s394 = sand.u32 %s99, 1
        %s395 = smul.addr %s394, 64
        %s396 = scalar_lea.vmem [#allocation7], %s395
        // Predicated region
        $region86: #{tpu_custom_call.1} parent=76 // pred_check
          %p397 = pneg %p112
        $region87: #{tpu_custom_call.1} parent=76 // pred_check_branch
          %399 = sbr.rel (%p397) target = $region89
        $region88: #{tpu_custom_call.1} parent=76 // pred_region
          %400 = dma.done %s393, 1024
        $region89: #{tpu_custom_call.1} parent=76 // pred_fallthru
          _
        %s401 = sand.u32 %s47, 1
        %s402 = sand.u32 %s47, 1
        %s403 = smul.addr %s402, 64
        %s404 = scalar_lea.vmem [#allocation3], %s403
        %p405 = pneg %p60
        %p406 = pneg %p57
        %s407 = sand.u32 %s73, 1
        %s408 = scalar_lea.sflag [#allocation5], %s407
        %s409 = sand.u32 %s73, 1
        %s410 = smul.addr %s409, 64
        %s411 = scalar_lea.vmem [#allocation4], %s410
        %p412 = pneg %p86
        %p413 = pneg %p83
        %s414 = sand.u32 %s99, 1
        %s415 = scalar_lea.sflag [#allocation8], %s414
        %s416 = sand.u32 %s99, 1
        %s417 = smul.addr %s416, 64
        %s418 = scalar_lea.vmem [#allocation7], %s417
        %p419 = pneg %p112
        %p420 = pneg %p109
        %s421 = smul.u32 16, %s29
        %p422 = scmp.lt.s32.totalorder %s421, 31
        %s423 = scalar_select %p422, %s421, 31
        %s424 = smul.addr %s423, 8
        %s425 = scalar_lea.vmem %s3, %s424
        %p426 = pneg %p138
        %p427 = pneg %p135
        %p428 = pneg %p159
        %p429 = pneg %p156
        %p430 = pneg %p185
        %p431 = pneg %p182
        %s432 = sand.u32 %s172, 1
        %s433 = scalar_lea.sflag [#allocation6], %s432
        %s434 = sand.u32 %s172, 1
        %s435 = smul.addr %s434, 128
        %s436 = scalar_lea.vmem [#allocation9], %s435
        %s437 = smul.u32 16, %s29
        %s438 = smul.u32 16, %s30
        %s439 = smul.u32 16, %s29
        %s440 = smul.u32 16, %s29
        %p441 = scmp.lt.s32.totalorder %s440, 31
        %s442 = scalar_select %p441, %s440, 31
        %s443 = smul.addr %s442, 8
        %s444 = scalar_lea.vmem %s3, %s443
        %s445 = smul.u32 16, %s29
        %s446 = smul.u32 16, %s29
        %p448 = scmp.eq.s32.totalorder %s30, 0
        // Predicated region
        $region90: #{tpu_custom_call.1} parent=76 // pred_check
          %p449 = pneg %p448
        $region91: #{tpu_custom_call.1} parent=76 // pred_check_branch
          %451 = sbr.rel (%p449) target = $region93
        $region92: #{tpu_custom_call.1} parent=76 // pred_region
          %452 = vst [vmem:[#allocation2] sm:$0xff] 0.0
          %453 = vst [vmem:[#allocation2 + $0x8] sm:$0xff] 0.0
          %454 = vst [vmem:[#allocation2 + $0x10] sm:$0xff] 0.0
          %455 = vst [vmem:[#allocation2 + $0x18] sm:$0xff] 0.0
          %456 = vst [vmem:[#allocation2 + $0x20] sm:$0xff] 0.0
          %457 = vst [vmem:[#allocation2 + $0x28] sm:$0xff] 0.0
          %458 = vst [vmem:[#allocation2 + $0x30] sm:$0xff] 0.0
          %459 = vst [vmem:[#allocation2 + $0x38] sm:$0xff] 0.0
          %460 = vst [vmem:[#allocation2 + $0x40] sm:$0xff] 0.0
          %461 = vst [vmem:[#allocation2 + $0x48] sm:$0xff] 0.0
          %462 = vst [vmem:[#allocation2 + $0x50] sm:$0xff] 0.0
          %463 = vst [vmem:[#allocation2 + $0x58] sm:$0xff] 0.0
          %464 = vst [vmem:[#allocation2 + $0x60] sm:$0xff] 0.0
          %465 = vst [vmem:[#allocation2 + $0x68] sm:$0xff] 0.0
          %466 = vst [vmem:[#allocation2 + $0x70] sm:$0xff] 0.0
          %467 = vst [vmem:[#allocation2 + $0x78] sm:$0xff] 0.0
        $region93: #{tpu_custom_call.1} parent=76 // pred_fallthru
          _
        %v468 = vld [vmem:[#allocation2] sm:$0xff]
        %v469 = vld [vmem:[#allocation2 + $0x8] sm:$0xff]
        %v470 = vld [vmem:[#allocation2 + $0x10] sm:$0xff]
        %v471 = vld [vmem:[#allocation2 + $0x18] sm:$0xff]
        %v472 = vld [vmem:[#allocation2 + $0x20] sm:$0xff]
        %v473 = vld [vmem:[#allocation2 + $0x28] sm:$0xff]
        %v474 = vld [vmem:[#allocation2 + $0x30] sm:$0xff]
        %v475 = vld [vmem:[#allocation2 + $0x38] sm:$0xff]
        %v476 = vld [vmem:[#allocation2 + $0x40] sm:$0xff]
        %v477 = vld [vmem:[#allocation2 + $0x48] sm:$0xff]
        %v478 = vld [vmem:[#allocation2 + $0x50] sm:$0xff]
        %v479 = vld [vmem:[#allocation2 + $0x58] sm:$0xff]
        %v480 = vld [vmem:[#allocation2 + $0x60] sm:$0xff]
        %v481 = vld [vmem:[#allocation2 + $0x68] sm:$0xff]
        %v482 = vld [vmem:[#allocation2 + $0x70] sm:$0xff]
        %v483 = vld [vmem:[#allocation2 + $0x78] sm:$0xff]
        %v484 = vld [vmem:[%s379] sm:$0xf]
        %v485 = vld [vmem:[%s379 + $0x4] sm:$0xf]
        %v486 = vld [vmem:[%s379 + $0x8] sm:$0xf]
        %v487 = vld [vmem:[%s379 + $0xc] sm:$0xf]
        %v488 = vld [vmem:[%s379 + $0x10] sm:$0xf]
        %v489 = vld [vmem:[%s379 + $0x14] sm:$0xf]
        %v490 = vld [vmem:[%s379 + $0x18] sm:$0xf]
        %v491 = vld [vmem:[%s379 + $0x1c] sm:$0xf]
        %v492 = vld [vmem:[%s379 + $0x20] sm:$0xf]
        %v493 = vld [vmem:[%s379 + $0x24] sm:$0xf]
        %v494 = vld [vmem:[%s379 + $0x28] sm:$0xf]
        %v495 = vld [vmem:[%s379 + $0x2c] sm:$0xf]
        %v496 = vld [vmem:[%s379 + $0x30] sm:$0xf]
        %v497 = vld [vmem:[%s379 + $0x34] sm:$0xf]
        %v498 = vld [vmem:[%s379 + $0x38] sm:$0xf]
        %v499 = vld [vmem:[%s379 + $0x3c] sm:$0xf]
        %v500 = vld [vmem:[%s387] sm:$0xf]
        %v501 = vld [vmem:[%s387 + $0x4] sm:$0xf]
        %v502 = vld [vmem:[%s387 + $0x8] sm:$0xf]
        %v503 = vld [vmem:[%s387 + $0xc] sm:$0xf]
        %v504 = vld [vmem:[%s387 + $0x10] sm:$0xf]
        %v505 = vld [vmem:[%s387 + $0x14] sm:$0xf]
        %v506 = vld [vmem:[%s387 + $0x18] sm:$0xf]
        %v507 = vld [vmem:[%s387 + $0x1c] sm:$0xf]
        %v508 = vld [vmem:[%s387 + $0x20] sm:$0xf]
        %v509 = vld [vmem:[%s387 + $0x24] sm:$0xf]
        %v510 = vld [vmem:[%s387 + $0x28] sm:$0xf]
        %v511 = vld [vmem:[%s387 + $0x2c] sm:$0xf]
        %v512 = vld [vmem:[%s387 + $0x30] sm:$0xf]
        %v513 = vld [vmem:[%s387 + $0x34] sm:$0xf]
        %v514 = vld [vmem:[%s387 + $0x38] sm:$0xf]
        %v515 = vld [vmem:[%s387 + $0x3c] sm:$0xf]
        %v532 = vunpack.c.l.b16 %v484
        %v533 = vunpack.c.l.b16 %v485
        %v534 = vunpack.c.l.b16 %v486
        %v535 = vunpack.c.l.b16 %v487
        %v536 = vunpack.c.l.b16 %v488
        %v537 = vunpack.c.l.b16 %v489
        %v538 = vunpack.c.l.b16 %v490
        %v539 = vunpack.c.l.b16 %v491
        %v540 = vunpack.c.l.b16 %v492
        %v541 = vunpack.c.l.b16 %v493
        %v542 = vunpack.c.l.b16 %v494
        %v543 = vunpack.c.l.b16 %v495
        %v544 = vunpack.c.l.b16 %v496
        %v545 = vunpack.c.l.b16 %v497
        %v546 = vunpack.c.l.b16 %v498
        %v547 = vunpack.c.l.b16 %v499
        %v548 = vpack.c.b16 %v533, %v532
        %v549 = vpack.c.b16 %v535, %v534
        %v550 = vpack.c.b16 %v537, %v536
        %v551 = vpack.c.b16 %v539, %v538
        %v552 = vpack.c.b16 %v541, %v540
        %v553 = vpack.c.b16 %v543, %v542
        %v554 = vpack.c.b16 %v545, %v544
        %v555 = vpack.c.b16 %v547, %v546
        %v580 = vunpack.c.l.b16 %v500
        %v581 = vunpack.c.l.b16 %v501
        %v582 = vunpack.c.l.b16 %v502
        %v583 = vunpack.c.l.b16 %v503
        %v584 = vunpack.c.l.b16 %v504
        %v585 = vunpack.c.l.b16 %v505
        %v586 = vunpack.c.l.b16 %v506
        %v587 = vunpack.c.l.b16 %v507
        %v588 = vunpack.c.l.b16 %v508
        %v589 = vunpack.c.l.b16 %v509
        %v590 = vunpack.c.l.b16 %v510
        %v591 = vunpack.c.l.b16 %v511
        %v592 = vunpack.c.l.b16 %v512
        %v593 = vunpack.c.l.b16 %v513
        %v594 = vunpack.c.l.b16 %v514
        %v595 = vunpack.c.l.b16 %v515
        %v596 = vpack.c.b16 %v581, %v580
        %v597 = vpack.c.b16 %v583, %v582
        %v598 = vpack.c.b16 %v585, %v584
        %v599 = vpack.c.b16 %v587, %v586
        %v600 = vpack.c.b16 %v589, %v588
        %v601 = vpack.c.b16 %v591, %v590
        %v602 = vpack.c.b16 %v593, %v592
        %v603 = vpack.c.b16 %v595, %v594
        %612 = vmatprep.subr.bf16.mxu0 0
        %613 = vmatpush1.bf16.msra.mxu0 %v596
        %614 = vmatprep.subr.bf16.mxu0 0
        %615 = vmatpush1.bf16.msra.mxu0 %v597
        %616 = vmatprep.subr.bf16.mxu0 0
        %617 = vmatpush1.bf16.msra.mxu0 %v598
        %618 = vmatprep.subr.bf16.mxu0 0
        %619 = vmatpush1.bf16.msra.mxu0 %v599
        %620 = vmatprep.subr.bf16.mxu0 0
        %621 = vmatpush1.bf16.msra.mxu0 %v600
        %622 = vmatprep.subr.bf16.mxu0 0
        %623 = vmatpush1.bf16.msra.mxu0 %v601
        %624 = vmatprep.subr.bf16.mxu0 0
        %625 = vmatpush1.bf16.msra.mxu0 %v602
        %626 = vmatprep.subr.bf16.mxu0 0
        %627 = vmatpush1.bf16.msra.mxu0 %v603
        %628 = vmatprep.subr.bf16.mxu0 0
        %629 = vmatpush1.bf16.msra.mxu0 0
        %630 = vmatprep.subr.bf16.mxu0 0
        %631 = vmatpush1.bf16.msra.mxu0 0
        %632 = vmatprep.subr.bf16.mxu0 0
        %633 = vmatpush1.bf16.msra.mxu0 0
        %634 = vmatprep.subr.bf16.mxu0 0
        %635 = vmatpush1.bf16.msra.mxu0 0
        %636 = vmatprep.subr.bf16.mxu0 0
        %637 = vmatpush1.bf16.msra.mxu0 0
        %638 = vmatprep.subr.bf16.mxu0 0
        %639 = vmatpush1.bf16.msra.mxu0 0
        %640 = vmatprep.subr.bf16.mxu0 0
        %641 = vmatpush1.bf16.msra.mxu0 0
        %642 = vmatprep.subr.bf16.mxu0 0
        %643 = vmatpush1.bf16.msra.mxu0 0
        %644 = vmatprep.mubr.bf16.mxu0 0
        %645 = vmatmul.mubr.bf16.gmra.mrb[0].mxu0 %v548
        %v646 = vpop.f32.mrb[0].mxu0
        %v647 = vadd.f32 0.0, %v646
        %v648 = vpop.f32.mrb[0].mxu0
        %v649 = vpop.f32.mrb[0].mxu0
        %v650 = vadd.f32 0.0, %v649
        %v651 = vpop.f32.mrb[0].mxu0
        %652 = vmatprep.mubr.bf16.mxu0 0
        %653 = vmatmul.mubr.bf16.gmra.mrb[0].mxu0 %v549
        %v654 = vpop.f32.mrb[0].mxu0
        %v655 = vadd.f32 0.0, %v654
        %v656 = vpop.f32.mrb[0].mxu0
        %v657 = vpop.f32.mrb[0].mxu0
        %v658 = vadd.f32 0.0, %v657
        %v659 = vpop.f32.mrb[0].mxu0
        %660 = vmatprep.mubr.bf16.mxu0 0
        %661 = vmatmul.mubr.bf16.gmra.mrb[0].mxu0 %v550
        %v662 = vpop.f32.mrb[0].mxu0
        %v663 = vadd.f32 0.0, %v662
        %v664 = vpop.f32.mrb[0].mxu0
        %v665 = vpop.f32.mrb[0].mxu0
        %v666 = vadd.f32 0.0, %v665
        %v667 = vpop.f32.mrb[0].mxu0
        %668 = vmatprep.mubr.bf16.mxu0 0
        %669 = vmatmul.mubr.bf16.gmra.mrb[0].mxu0 %v551
        %v670 = vpop.f32.mrb[0].mxu0
        %v671 = vadd.f32 0.0, %v670
        %v672 = vpop.f32.mrb[0].mxu0
        %v673 = vpop.f32.mrb[0].mxu0
        %v674 = vadd.f32 0.0, %v673
        %v675 = vpop.f32.mrb[0].mxu0
        %676 = vmatprep.mubr.bf16.mxu0 0
        %677 = vmatmul.mubr.bf16.gmra.mrb[0].mxu0 %v552
        %v678 = vpop.f32.mrb[0].mxu0
        %v679 = vadd.f32 0.0, %v678
        %v680 = vpop.f32.mrb[0].mxu0
        %v681 = vpop.f32.mrb[0].mxu0
        %v682 = vadd.f32 0.0, %v681
        %v683 = vpop.f32.mrb[0].mxu0
        %684 = vmatprep.mubr.bf16.mxu0 0
        %685 = vmatmul.mubr.bf16.gmra.mrb[0].mxu0 %v553
        %v686 = vpop.f32.mrb[0].mxu0
        %v687 = vadd.f32 0.0, %v686
        %v688 = vpop.f32.mrb[0].mxu0
        %v689 = vpop.f32.mrb[0].mxu0
        %v690 = vadd.f32 0.0, %v689
        %v691 = vpop.f32.mrb[0].mxu0
        %692 = vmatprep.mubr.bf16.mxu0 0
        %693 = vmatmul.mubr.bf16.gmra.mrb[0].mxu0 %v554
        %v694 = vpop.f32.mrb[0].mxu0
        %v695 = vadd.f32 0.0, %v694
        %v696 = vpop.f32.mrb[0].mxu0
        %v697 = vpop.f32.mrb[0].mxu0
        %v698 = vadd.f32 0.0, %v697
        %v699 = vpop.f32.mrb[0].mxu0
        %700 = vmatprep.mubr.bf16.mxu0 0
        %701 = vmatmul.mubr.bf16.gmra.mrb[0].mxu0 %v555
        %v702 = vpop.f32.mrb[0].mxu0
        %v703 = vadd.f32 0.0, %v702
        %v704 = vpop.f32.mrb[0].mxu0
        %v705 = vpop.f32.mrb[0].mxu0
        %v706 = vadd.f32 0.0, %v705
        %v707 = vpop.f32.mrb[0].mxu0
        %708 = vdwg.mxu0
        %v709 = vadd.f32 %v468, %v647
        %v710 = vadd.f32 %v469, %v650
        %v711 = vadd.f32 %v470, %v655
        %v712 = vadd.f32 %v471, %v658
        %v713 = vadd.f32 %v472, %v663
        %v714 = vadd.f32 %v473, %v666
        %v715 = vadd.f32 %v474, %v671
        %v716 = vadd.f32 %v475, %v674
        %v717 = vadd.f32 %v476, %v679
        %v718 = vadd.f32 %v477, %v682
        %v719 = vadd.f32 %v478, %v687
        %v720 = vadd.f32 %v479, %v690
        %v721 = vadd.f32 %v480, %v695
        %v722 = vadd.f32 %v481, %v698
        %v723 = vadd.f32 %v482, %v703
        %v724 = vadd.f32 %v483, %v706
        %725 = vst [vmem:[#allocation2] sm:$0xff] %v709
        %726 = vst [vmem:[#allocation2 + $0x8] sm:$0xff] %v710
        %727 = vst [vmem:[#allocation2 + $0x10] sm:$0xff] %v711
        %728 = vst [vmem:[#allocation2 + $0x18] sm:$0xff] %v712
        %729 = vst [vmem:[#allocation2 + $0x20] sm:$0xff] %v713
        %730 = vst [vmem:[#allocation2 + $0x28] sm:$0xff] %v714
        %731 = vst [vmem:[#allocation2 + $0x30] sm:$0xff] %v715
        %732 = vst [vmem:[#allocation2 + $0x38] sm:$0xff] %v716
        %733 = vst [vmem:[#allocation2 + $0x40] sm:$0xff] %v717
        %734 = vst [vmem:[#allocation2 + $0x48] sm:$0xff] %v718
        %735 = vst [vmem:[#allocation2 + $0x50] sm:$0xff] %v719
        %736 = vst [vmem:[#allocation2 + $0x58] sm:$0xff] %v720
        %737 = vst [vmem:[#allocation2 + $0x60] sm:$0xff] %v721
        %738 = vst [vmem:[#allocation2 + $0x68] sm:$0xff] %v722
        %739 = vst [vmem:[#allocation2 + $0x70] sm:$0xff] %v723
        %740 = vst [vmem:[#allocation2 + $0x78] sm:$0xff] %v724
        %p741 = scmp.eq.s32.totalorder %s30, 1
        // Predicated region
        $region94: #{tpu_custom_call.1} parent=76 // pred_check
          %p742 = pneg %p741
        $region95: #{tpu_custom_call.1} parent=76 // pred_check_branch
          %744 = sbr.rel (%p742) target = $region97
        $region96: #{tpu_custom_call.1} parent=76 // pred_region
          %v745 = vld [vmem:[#allocation2] sm:$0xff]
          %v746 = vld [vmem:[#allocation2 + $0x8] sm:$0xff]
          %v747 = vld [vmem:[#allocation2 + $0x10] sm:$0xff]
          %v748 = vld [vmem:[#allocation2 + $0x18] sm:$0xff]
          %v749 = vld [vmem:[#allocation2 + $0x20] sm:$0xff]
          %v750 = vld [vmem:[#allocation2 + $0x28] sm:$0xff]
          %v751 = vld [vmem:[#allocation2 + $0x30] sm:$0xff]
          %v752 = vld [vmem:[#allocation2 + $0x38] sm:$0xff]
          %v753 = vld [vmem:[#allocation2 + $0x40] sm:$0xff]
          %v754 = vld [vmem:[#allocation2 + $0x48] sm:$0xff]
          %v755 = vld [vmem:[#allocation2 + $0x50] sm:$0xff]
          %v756 = vld [vmem:[#allocation2 + $0x58] sm:$0xff]
          %v757 = vld [vmem:[#allocation2 + $0x60] sm:$0xff]
          %v758 = vld [vmem:[#allocation2 + $0x68] sm:$0xff]
          %v759 = vld [vmem:[#allocation2 + $0x70] sm:$0xff]
          %v760 = vld [vmem:[#allocation2 + $0x78] sm:$0xff]
          %v761 = vld [vmem:[%s396] sm:$0xf]
          %v762 = vld [vmem:[%s396 + $0x4] sm:$0xf]
          %v763 = vld [vmem:[%s396 + $0x8] sm:$0xf]
          %v764 = vld [vmem:[%s396 + $0xc] sm:$0xf]
          %v765 = vld [vmem:[%s396 + $0x10] sm:$0xf]
          %v766 = vld [vmem:[%s396 + $0x14] sm:$0xf]
          %v767 = vld [vmem:[%s396 + $0x18] sm:$0xf]
          %v768 = vld [vmem:[%s396 + $0x1c] sm:$0xf]
          %v769 = vld [vmem:[%s396 + $0x20] sm:$0xf]
          %v770 = vld [vmem:[%s396 + $0x24] sm:$0xf]
          %v771 = vld [vmem:[%s396 + $0x28] sm:$0xf]
          %v772 = vld [vmem:[%s396 + $0x2c] sm:$0xf]
          %v773 = vld [vmem:[%s396 + $0x30] sm:$0xf]
          %v774 = vld [vmem:[%s396 + $0x34] sm:$0xf]
          %v775 = vld [vmem:[%s396 + $0x38] sm:$0xf]
          %v776 = vld [vmem:[%s396 + $0x3c] sm:$0xf]
          %v777 = vunpack.c.l.bf16 %v761
          %v778 = vunpack.c.l.bf16 %v762
          %v779 = vunpack.c.l.bf16 %v763
          %v780 = vunpack.c.l.bf16 %v764
          %v781 = vunpack.c.l.bf16 %v765
          %v782 = vunpack.c.l.bf16 %v766
          %v783 = vunpack.c.l.bf16 %v767
          %v784 = vunpack.c.l.bf16 %v768
          %v785 = vunpack.c.l.bf16 %v769
          %v786 = vunpack.c.l.bf16 %v770
          %v787 = vunpack.c.l.bf16 %v771
          %v788 = vunpack.c.l.bf16 %v772
          %v789 = vunpack.c.l.bf16 %v773
          %v790 = vunpack.c.l.bf16 %v774
          %v791 = vunpack.c.l.bf16 %v775
          %v792 = vunpack.c.l.bf16 %v776
          %v793 = vadd.f32 %v745, %v777
          %v794 = vadd.f32 %v746, %v778
          %v795 = vadd.f32 %v747, %v779
          %v796 = vadd.f32 %v748, %v780
          %v797 = vadd.f32 %v749, %v781
          %v798 = vadd.f32 %v750, %v782
          %v799 = vadd.f32 %v751, %v783
          %v800 = vadd.f32 %v752, %v784
          %v801 = vadd.f32 %v753, %v785
          %v802 = vadd.f32 %v754, %v786
          %v803 = vadd.f32 %v755, %v787
          %v804 = vadd.f32 %v756, %v788
          %v805 = vadd.f32 %v757, %v789
          %v806 = vadd.f32 %v758, %v790
          %v807 = vadd.f32 %v759, %v791
          %v808 = vadd.f32 %v760, %v792
          %v809 = vld [vmem:[%s444] sm:$0xff]
          %v810 = vld [vmem:[%s444 + $0x8] sm:$0xff]
          %v811 = vld [vmem:[%s444 + $0x10] sm:$0xff]
          %v812 = vld [vmem:[%s444 + $0x18] sm:$0xff]
          %v813 = vld [vmem:[%s444 + $0x20] sm:$0xff]
          %v814 = vld [vmem:[%s444 + $0x28] sm:$0xff]
          %v815 = vld [vmem:[%s444 + $0x30] sm:$0xff]
          %v816 = vld [vmem:[%s444 + $0x38] sm:$0xff]
          %v817 = vld [vmem:[%s444 + $0x40] sm:$0xff]
          %v818 = vld [vmem:[%s444 + $0x48] sm:$0xff]
          %v819 = vld [vmem:[%s444 + $0x50] sm:$0xff]
          %v820 = vld [vmem:[%s444 + $0x58] sm:$0xff]
          %v821 = vld [vmem:[%s444 + $0x60] sm:$0xff]
          %v822 = vld [vmem:[%s444 + $0x68] sm:$0xff]
          %v823 = vld [vmem:[%s444 + $0x70] sm:$0xff]
          %v824 = vld [vmem:[%s444 + $0x78] sm:$0xff]
          %826 = vset.pattern.permute.xlu0 0
          %827 = vperm.xlu0 %826, %v809
          %v828 = vpop.permute.xlu0 %827
          %831 = vset.pattern.permute.xlu0 0
          %832 = vperm.xlu0 %831, %v810
          %v833 = vpop.permute.xlu0 %832
          %836 = vset.pattern.permute.xlu0 0
          %837 = vperm.xlu0 %836, %v811
          %v838 = vpop.permute.xlu0 %837
          %841 = vset.pattern.permute.xlu0 0
          %842 = vperm.xlu0 %841, %v812
          %v843 = vpop.permute.xlu0 %842
          %846 = vset.pattern.permute.xlu0 0
          %847 = vperm.xlu0 %846, %v813
          %v848 = vpop.permute.xlu0 %847
          %851 = vset.pattern.permute.xlu0 0
          %852 = vperm.xlu0 %851, %v814
          %v853 = vpop.permute.xlu0 %852
          %856 = vset.pattern.permute.xlu0 0
          %857 = vperm.xlu0 %856, %v815
          %v858 = vpop.permute.xlu0 %857
          %861 = vset.pattern.permute.xlu0 0
          %862 = vperm.xlu0 %861, %v816
          %v863 = vpop.permute.xlu0 %862
          %866 = vset.pattern.permute.xlu0 0
          %867 = vperm.xlu0 %866, %v817
          %v868 = vpop.permute.xlu0 %867
          %871 = vset.pattern.permute.xlu0 0
          %872 = vperm.xlu0 %871, %v818
          %v873 = vpop.permute.xlu0 %872
          %876 = vset.pattern.permute.xlu0 0
          %877 = vperm.xlu0 %876, %v819
          %v878 = vpop.permute.xlu0 %877
          %881 = vset.pattern.permute.xlu0 0
          %882 = vperm.xlu0 %881, %v820
          %v883 = vpop.permute.xlu0 %882
          %886 = vset.pattern.permute.xlu0 0
          %887 = vperm.xlu0 %886, %v821
          %v888 = vpop.permute.xlu0 %887
          %891 = vset.pattern.permute.xlu0 0
          %892 = vperm.xlu0 %891, %v822
          %v893 = vpop.permute.xlu0 %892
          %896 = vset.pattern.permute.xlu0 0
          %897 = vperm.xlu0 %896, %v823
          %v898 = vpop.permute.xlu0 %897
          %901 = vset.pattern.permute.xlu0 0
          %902 = vperm.xlu0 %901, %v824
          %v903 = vpop.permute.xlu0 %902
          %v905 = vmul.f32 %v828, %v793
          %v906 = vmul.f32 %v833, %v794
          %v907 = vmul.f32 %v838, %v795
          %v908 = vmul.f32 %v843, %v796
          %v909 = vmul.f32 %v848, %v797
          %v910 = vmul.f32 %v853, %v798
          %v911 = vmul.f32 %v858, %v799
          %v912 = vmul.f32 %v863, %v800
          %v913 = vmul.f32 %v868, %v801
          %v914 = vmul.f32 %v873, %v802
          %v915 = vmul.f32 %v878, %v803
          %v916 = vmul.f32 %v883, %v804
          %v917 = vmul.f32 %v888, %v805
          %v918 = vmul.f32 %v893, %v806
          %v919 = vmul.f32 %v898, %v807
          %v920 = vmul.f32 %v903, %v808
          %v921 = vld [vmem:[%s4] sm:$0x1]
          %v923 = vlaneseq
          %v924 = vshrl.u32 %v923, 7
          %v925 = vsub.s32 0, %v924
          %v926 = vrot.slane %v921, %v925
          %v928 = vadd.f32 %v905, %v926
          %v929 = vadd.f32 %v906, %v926
          %v930 = vadd.f32 %v907, %v926
          %v931 = vadd.f32 %v908, %v926
          %v932 = vadd.f32 %v909, %v926
          %v933 = vadd.f32 %v910, %v926
          %v934 = vadd.f32 %v911, %v926
          %v935 = vadd.f32 %v912, %v926
          %v936 = vadd.f32 %v913, %v926
          %v937 = vadd.f32 %v914, %v926
          %v938 = vadd.f32 %v915, %v926
          %v939 = vadd.f32 %v916, %v926
          %v940 = vadd.f32 %v917, %v926
          %v941 = vadd.f32 %v918, %v926
          %v942 = vadd.f32 %v919, %v926
          %v943 = vadd.f32 %v920, %v926
          %v944 = vmax.f32 %v928, 0.0
          %v945 = vmax.f32 %v929, 0.0
          %v946 = vmax.f32 %v930, 0.0
          %v947 = vmax.f32 %v931, 0.0
          %v948 = vmax.f32 %v932, 0.0
          %v949 = vmax.f32 %v933, 0.0
          %v950 = vmax.f32 %v934, 0.0
          %v951 = vmax.f32 %v935, 0.0
          %v952 = vmax.f32 %v936, 0.0
          %v953 = vmax.f32 %v937, 0.0
          %v954 = vmax.f32 %v938, 0.0
          %v955 = vmax.f32 %v939, 0.0
          %v956 = vmax.f32 %v940, 0.0
          %v957 = vmax.f32 %v941, 0.0
          %v958 = vmax.f32 %v942, 0.0
          %v959 = vmax.f32 %v943, 0.0
          %960 = vst [vmem:[%s436] sm:$0xff] %v944
          %961 = vst [vmem:[%s436 + $0x8] sm:$0xff] %v945
          %962 = vst [vmem:[%s436 + $0x10] sm:$0xff] %v946
          %963 = vst [vmem:[%s436 + $0x18] sm:$0xff] %v947
          %964 = vst [vmem:[%s436 + $0x20] sm:$0xff] %v948
          %965 = vst [vmem:[%s436 + $0x28] sm:$0xff] %v949
          %966 = vst [vmem:[%s436 + $0x30] sm:$0xff] %v950
          %967 = vst [vmem:[%s436 + $0x38] sm:$0xff] %v951
          %968 = vst [vmem:[%s436 + $0x40] sm:$0xff] %v952
          %969 = vst [vmem:[%s436 + $0x48] sm:$0xff] %v953
          %970 = vst [vmem:[%s436 + $0x50] sm:$0xff] %v954
          %971 = vst [vmem:[%s436 + $0x58] sm:$0xff] %v955
          %972 = vst [vmem:[%s436 + $0x60] sm:$0xff] %v956
          %973 = vst [vmem:[%s436 + $0x68] sm:$0xff] %v957
          %974 = vst [vmem:[%s436 + $0x70] sm:$0xff] %v958
          %975 = vst [vmem:[%s436 + $0x78] sm:$0xff] %v959
        $region97: #{tpu_custom_call.1} parent=76 // pred_fallthru
          _
        %s976 = sand.u32 %s172, 1
        %s977 = scalar_lea.sflag [#allocation6], %s976
        %s978 = sand.u32 %s172, 1
        %s979 = smul.addr %s978, 128
        %s980 = scalar_lea.vmem [#allocation9], %s979
        // Predicated region
        $region98: #{tpu_custom_call.1} parent=76 // pred_check
          %p981 = pneg %p182
        $region99: #{tpu_custom_call.1} parent=76 // pred_check_branch
          %983 = sbr.rel (%p981) target = $region101
        $region100: #{tpu_custom_call.1} parent=76 // pred_region
          %s984 = smul.u32 16, %s29
          %s986 = ssub.s32 2048, 2048
          %987 = vsyncadd %s977, %s986
          %s988 = smul.addr %s984, 128
          %s989 = scalar_lea.hbm %s5, %s988
          %s990 = sshll.u32 %s980, 4
          %s991 = int_to_ptr.vmem [resolvable:$true] %s990
          %996 = dma.vmem_to_hbm [thread:$0]  %s991, 2048, %s989, %s977, 128, 128, 8
        $region101: #{tpu_custom_call.1} parent=76 // pred_fallthru
          _
      $region77: #{tpu_custom_call.1} parent=5 // pred_fallthru
        _
      %p997 = scmp.le.s32.totalorder 2, %s20
      // Predicated region
      $region102: #{tpu_custom_call.1} parent=5 // pred_check
        %p998 = pneg %p997
      $region103: #{tpu_custom_call.1} parent=5 // pred_check_branch
        %1000 = sbr.rel (%p998) target = $region105
      $region104: #{tpu_custom_call.1} parent=5 // pred_region
        %s1001 = ssub.s32 %s20, 2
        // Predicated region
        $region106: #{tpu_custom_call.1} parent=104 // pred_check
          %p1002 = pneg %p188
        $region107: #{tpu_custom_call.1} parent=104 // pred_check_branch
          %1004 = sbr.rel (%p1002) target = $region109
        $region108: #{tpu_custom_call.1} parent=104 // pred_region
          %s1005 = sand.u32 %s173, 1
          %s1006 = scalar_lea.sflag [#allocation6], %s1005
          %s1007 = sand.u32 %s173, 1
          %s1008 = smul.addr %s1007, 128
          %s1009 = scalar_lea.vmem [#allocation9], %s1008
          %1010 = dma.done %s1006, 2048
        $region109: #{tpu_custom_call.1} parent=104 // pred_fallthru
          _
      $region105: #{tpu_custom_call.1} parent=5 // pred_fallthru
        _
    $region6: #{tpu_custom_call.1} parent=1 // loop_footer
      %s24 = sadd.s32 1, %s20
    $region7: #{tpu_custom_call.1} parent=1 // loop_footer_branch
      %19 = sbr.rel target = $region3
    $region8: #{tpu_custom_call.1} parent=1 // loop_exit
      _
    %1011 = vsyncpa [#allocation5], 1
    %s1012 = scalar_lea.sflag [#allocation5], 1
    %1013 = vsyncpa %s1012, 1
    %1014 = vsyncpa [#allocation8], 1
    %s1015 = scalar_lea.sflag [#allocation8], 1
    %1016 = vsyncpa %s1015, 1
    %1017 = vsyncpa [#allocation6], 1
    %s1018 = scalar_lea.sflag [#allocation6], 1
    %1019 = vsyncpa %s1018, 1

</llo_original>
